<compile_context>
chip_gen: v6e
topology: v6e:2x2x1
jax: 0.10.0
libtpu: 0.0.40
codegen_flags: <defaults>
</compile_context>

<pallas_src>
import jax
import jax.numpy as jnp
from jax.experimental import pallas as pl
from jax.experimental.pallas import tpu as pltpu


def _round_up(x, m):
    return ((x + m - 1) // m) * m


def _swem_kernel(tok_ref, emb_hbm, w1_ref, b1_ref, w2_ref, b2_ref,
                 out_ref, rows_ref, sem_ref):
    """One grid step = one batch tile of TB rows.

    tok_ref : SMEM int32 [B_pad, L]    (scalar-prefetched token ids)
    emb_hbm : HBM  [V, E]              (embedding table; manual row DMAs)
    w1_ref  : VMEM [E, H]    b1_ref : VMEM [1, H]
    w2_ref  : VMEM [H, Op]   b2_ref : VMEM [1, Op]
    out_ref : VMEM [TB, Op]
    rows_ref: VMEM [TB * L, E] scratch holding this tile's gathered rows
    sem_ref : DMA semaphore array, shape (1,)
    """
    i = pl.program_id(0)
    tb = out_ref.shape[0]
    n_rows, e_dim = rows_ref.shape
    seq_len = n_rows // tb

    # ---- 1) fused embedding gather: one row DMA per (batch row, position) ----
    # All copies share one semaphore and run concurrently.
    @pl.loop(0, tb)
    def _(b):
        @pl.loop(0, seq_len)
        def _(l):
            tok = tok_ref[i * tb + b, l]
            pltpu.make_async_copy(
                emb_hbm.at[pl.ds(tok, 1), :],                  # [1, E] table row
                rows_ref.at[pl.ds(l * tb + b, 1), :],          # its VMEM slot
                sem_ref.at[0],
            ).start()

    # Wait for every copy (same shape -> same completion amount per wait; the
    # destination slot is named so later reads of rows_ref are ordered).
    @pl.loop(0, tb)
    def _(b):
        @pl.loop(0, seq_len)
        def _(l):
            pltpu.make_async_copy(
                emb_hbm.at[pl.ds(0, 1), :],
                rows_ref.at[pl.ds(l * tb + b, 1), :],
                sem_ref.at[0],
            ).wait()

    # ---- 2) mean over the sequence (f32 accumulate, single 1/L multiply) ----
    rows = rows_ref[...].reshape(seq_len, tb, e_dim)        # tb is a multiple of 8
    mean = jnp.sum(rows, axis=0, dtype=jnp.float32) * (1.0 / seq_len)   # [TB, E]

    # ---- 3) fc1 -> ReLU -> fc2 on the MXU ----
    h = jnp.dot(mean, w1_ref[...], preferred_element_type=jnp.float32)
    h = jnp.maximum(h + b1_ref[...].astype(jnp.float32), 0.0)
    o = jnp.dot(h, w2_ref[...], preferred_element_type=jnp.float32)
    o = o + b2_ref[...].astype(jnp.float32)
    out_ref[...] = o.astype(out_ref.dtype)


def swem_forward(tokens, emb_table, w1, b1, w2, b2, *, block_b=None):
    """tokens: int [B, L]; emb_table: [V, E]; w1: [E, H]; b1: [H];
    w2: [H, O]; b2: [O].  Returns float32 [B, O]."""
    B, L = tokens.shape
    V, E = emb_table.shape
    E2, H = w1.shape
    H2, O = w2.shape
    assert E2 == E and H2 == H

    emb_itemsize = jnp.dtype(emb_table.dtype).itemsize

    # Batch tile: MXU-friendly (up to 256 rows), multiple of 8, and small
    # enough that the gathered-rows scratch stays well inside VMEM on every
    # generation (v7x: 64 MiB physical; v5e: 16 MiB default scoped).
    if block_b is None:
        tb = 256
        while tb > 8 and (tb > _round_up(B, 8)
                          or tb * L * E * emb_itemsize > (12 << 20)):
            tb //= 2
    else:
        tb = block_b
    tb = max(8, _round_up(tb, 8))
    b_pad = _round_up(B, tb)

    # Lane-dense output store: pad num_outputs up to a multiple of 128 and
    # slice back after the call.
    o_pad = _round_up(O, 128)

    tokens_p = jnp.pad(tokens.astype(jnp.int32), ((0, b_pad - B), (0, 0)))
    w2_p = jnp.pad(w2, ((0, 0), (0, o_pad - O)))
    b2_p = jnp.pad(b2, ((0, o_pad - O),))
    b1_2d = b1.reshape(1, H)
    b2_2d = b2_p.reshape(1, o_pad)

    grid = (b_pad // tb,)

    rows_bytes = tb * L * E * emb_itemsize
    weight_bytes = (E * H + H + H * o_pad + o_pad + tb * o_pad) * 4
    vmem_limit = int(min(48 << 20,
                         max(16 << 20,
                             2 * rows_bytes + 4 * weight_bytes + (4 << 20))))

    grid_spec = pltpu.PrefetchScalarGridSpec(
        num_scalar_prefetch=1,                                  # tokens -> SMEM
        grid=grid,
        in_specs=[
            pl.BlockSpec(memory_space=pl.ANY),                  # emb_table stays in HBM
            pl.BlockSpec((E, H), lambda i, tok: (0, 0)),        # w1 (resident)
            pl.BlockSpec((1, H), lambda i, tok: (0, 0)),        # b1
            pl.BlockSpec((H, o_pad), lambda i, tok: (0, 0)),    # w2
            pl.BlockSpec((1, o_pad), lambda i, tok: (0, 0)),    # b2
        ],
        out_specs=pl.BlockSpec((tb, o_pad), lambda i, tok: (i, 0)),
        scratch_shapes=[
            pltpu.VMEM((tb * L, E), emb_table.dtype),           # gathered rows
            pltpu.SemaphoreType.DMA((1,)),
        ],
    )

    out = pl.pallas_call(
        _swem_kernel,
        out_shape=jax.ShapeDtypeStruct((b_pad, o_pad), jnp.float32),
        grid_spec=grid_spec,
        compiler_params=pltpu.CompilerParams(
            dimension_semantics=("parallel",),                  # batch tiles -> 2 TCs on v7x
            vmem_limit_bytes=vmem_limit,
        ),
    )(tokens_p, emb_table, w1, b1_2d, w2_p, b2_2d)

    return out[:B, :O]


def _reference(tokens, emb_table, w1, b1, w2, b2):
    embed = jnp.take(emb_table, tokens, axis=0)
    m = jnp.mean(embed, axis=1)
    h = jnp.maximum(m @ w1 + b1, 0.0)
    return h @ w2 + b2


if __name__ == "__main__":
    # Small, deterministic config consistent with the module's __init__.
    vocab_size, embedding_size, hidden_dim, num_outputs = 64, 32, 32, 8
    batch, seq_len = 2, 8

    key = jax.random.PRNGKey(0)
    k_tok, k_emb, k_w1, k_b1, k_w2, k_b2 = jax.random.split(key, 6)

    tokens = jax.random.randint(k_tok, (batch, seq_len), 0, vocab_size,
                                dtype=jnp.int32)
    emb_table = jax.random.normal(k_emb, (vocab_size, embedding_size),
                                  dtype=jnp.float32)
    # nn.Linear keeps [out, in] and applies x @ W^T; we store the weights
    # pre-transposed as [in, out] — numerically identical.
    w1 = jax.random.normal(k_w1, (embedding_size, hidden_dim),
                           dtype=jnp.float32) * 0.1
    b1 = jax.random.normal(k_b1, (hidden_dim,), dtype=jnp.float32) * 0.1
    w2 = jax.random.normal(k_w2, (hidden_dim, num_outputs),
                           dtype=jnp.float32) * 0.1
    b2 = jax.random.normal(k_b2, (num_outputs,), dtype=jnp.float32) * 0.1

    out = swem_forward(tokens, emb_table, w1, b1, w2, b2)
    out = jax.block_until_ready(out)

    ref = _reference(tokens, emb_table, w1, b1, w2, b2)
    assert out.shape == (batch, num_outputs)
    assert jnp.allclose(out, ref, atol=1e-4, rtol=1e-4), "mismatch vs reference"

    print("KERNEL_OK")
</pallas_src>

<mosaic_0001>
module attributes {stable_mosaic.version = 11 : i64} {
  func.func @_swem_kernel(%arg0: i32, %arg1: memref<8x8xi32, #tpu.memory_space<smem>>, %arg2: memref<64x32xf32, #tpu.memory_space<any>>, %arg3: memref<32x32xf32, #tpu.memory_space<vmem>>, %arg4: memref<1x32xf32, #tpu.memory_space<vmem>>, %arg5: memref<32x128xf32, #tpu.memory_space<vmem>>, %arg6: memref<1x128xf32, #tpu.memory_space<vmem>>, %arg7: memref<8x128xf32, #tpu.memory_space<vmem>>, %arg8: memref<64x32xf32, #tpu.memory_space<vmem>>, %arg9: memref<1x!tpu.dma_semaphore, #tpu.memory_space<semaphore_mem>>) attributes {dimension_semantics = [#tpu.dimension_semantics<parallel>], iteration_bounds = array<i64: 1>, scalar_prefetch = 1 : i64, scratch_operands = 2 : i64, tpu.core_type = #tpu.core_type<tc>, window_params = [{}, {pipeline_mode = #tpu.pipeline_mode<synchronous>, transform_indices = @transform_1, window_bounds = array<i64: 32, 32>}, {pipeline_mode = #tpu.pipeline_mode<synchronous>, transform_indices = @transform_2, window_bounds = array<i64: 1, 32>}, {pipeline_mode = #tpu.pipeline_mode<synchronous>, transform_indices = @transform_3, window_bounds = array<i64: 32, 128>}, {pipeline_mode = #tpu.pipeline_mode<synchronous>, transform_indices = @transform_4, window_bounds = array<i64: 1, 128>}, {transform_indices = @transform_5, window_bounds = array<i64: 8, 128>}]} {
    %c0_i32 = arith.constant 0 : i32
    %c8_i32 = arith.constant 8 : i32
    %0 = arith.addi %c0_i32, %c8_i32 : i32
    %c1_i32 = arith.constant 1 : i32
    scf.for %arg10 = %c0_i32 to %0 step %c1_i32  : i32 {
      %c1_i32_20 = arith.constant 1 : i32
      %20 = arith.muli %arg10, %c1_i32_20 : i32
      %c0_i32_21 = arith.constant 0 : i32
      %21 = arith.addi %c0_i32_21, %20 : i32
      %c0_i32_22 = arith.constant 0 : i32
      %c8_i32_23 = arith.constant 8 : i32
      %22 = arith.addi %c0_i32_22, %c8_i32_23 : i32
      %c1_i32_24 = arith.constant 1 : i32
      scf.for %arg11 = %c0_i32_22 to %22 step %c1_i32_24  : i32 {
        %c1_i32_26 = arith.constant 1 : i32
        %23 = arith.muli %arg11, %c1_i32_26 : i32
        %c0_i32_27 = arith.constant 0 : i32
        %24 = arith.addi %c0_i32_27, %23 : i32
        %c8_i32_28 = arith.constant 8 : i32
        %25 = arith.muli %arg0, %c8_i32_28 : i32
        %26 = arith.addi %25, %21 : i32
        %27 = arith.index_cast %26 : i32 to index
        %28 = arith.index_cast %24 : i32 to index
        %29 = memref.load %arg1[%27, %28] : memref<8x8xi32, #tpu.memory_space<smem>>
        %c8_i32_29 = arith.constant 8 : i32
        %30 = arith.muli %24, %c8_i32_29 : i32
        %31 = arith.addi %30, %21 : i32
        %c0_i32_30 = arith.constant 0 : i32
        %c0_i32_31 = arith.constant 0 : i32
        %32 = tpu.memref_slice %arg2[%29, %c0_i32_31] : memref<64x32xf32, #tpu.memory_space<any>> -> memref<1x32xf32, #tpu.memory_space<any>>
        %c0_i32_32 = arith.constant 0 : i32
        %33 = tpu.memref_slice %arg8[%31, %c0_i32_32] : memref<64x32xf32, #tpu.memory_space<vmem>> -> memref<1x32xf32, #tpu.memory_space<vmem>>
        %34 = tpu.memref_slice %arg9[%c0_i32_30] : memref<1x!tpu.dma_semaphore, #tpu.memory_space<semaphore_mem>> -> memref<1x!tpu.dma_semaphore, #tpu.memory_space<semaphore_mem>>
        %35 = tpu.memref_squeeze %34 : memref<1x!tpu.dma_semaphore, #tpu.memory_space<semaphore_mem>> -> memref<!tpu.dma_semaphore, #tpu.memory_space<semaphore_mem>>
        tpu.enqueue_dma source(%32 : memref<1x32xf32, #tpu.memory_space<any>>) target(%33 : memref<1x32xf32, #tpu.memory_space<vmem>>) target_semaphore(%35 : memref<!tpu.dma_semaphore, #tpu.memory_space<semaphore_mem>>)
      }
      %c8_i32_25 = arith.constant 8 : i32
    }
    %c8_i32_0 = arith.constant 8 : i32
    %c0_i32_1 = arith.constant 0 : i32
    %c8_i32_2 = arith.constant 8 : i32
    %1 = arith.addi %c0_i32_1, %c8_i32_2 : i32
    %c1_i32_3 = arith.constant 1 : i32
    scf.for %arg10 = %c0_i32_1 to %1 step %c1_i32_3  : i32 {
      %c1_i32_20 = arith.constant 1 : i32
      %20 = arith.muli %arg10, %c1_i32_20 : i32
      %c0_i32_21 = arith.constant 0 : i32
      %21 = arith.addi %c0_i32_21, %20 : i32
      %c0_i32_22 = arith.constant 0 : i32
      %c8_i32_23 = arith.constant 8 : i32
      %22 = arith.addi %c0_i32_22, %c8_i32_23 : i32
      %c1_i32_24 = arith.constant 1 : i32
      scf.for %arg11 = %c0_i32_22 to %22 step %c1_i32_24  : i32 {
        %c1_i32_26 = arith.constant 1 : i32
        %23 = arith.muli %arg11, %c1_i32_26 : i32
        %c0_i32_27 = arith.constant 0 : i32
        %24 = arith.addi %c0_i32_27, %23 : i32
        %c8_i32_28 = arith.constant 8 : i32
        %25 = arith.muli %24, %c8_i32_28 : i32
        %26 = arith.addi %25, %21 : i32
        %c0_i32_29 = arith.constant 0 : i32
        %c0_i32_30 = arith.constant 0 : i32
        %c0_i32_31 = arith.constant 0 : i32
        %27 = tpu.memref_slice %arg2[%c0_i32_30, %c0_i32_31] : memref<64x32xf32, #tpu.memory_space<any>> -> memref<1x32xf32, #tpu.memory_space<any>>
        %c0_i32_32 = arith.constant 0 : i32
        %28 = tpu.memref_slice %arg8[%26, %c0_i32_32] : memref<64x32xf32, #tpu.memory_space<vmem>> -> memref<1x32xf32, #tpu.memory_space<vmem>>
        %29 = tpu.memref_slice %arg9[%c0_i32_29] : memref<1x!tpu.dma_semaphore, #tpu.memory_space<semaphore_mem>> -> memref<1x!tpu.dma_semaphore, #tpu.memory_space<semaphore_mem>>
        %30 = tpu.memref_squeeze %29 : memref<1x!tpu.dma_semaphore, #tpu.memory_space<semaphore_mem>> -> memref<!tpu.dma_semaphore, #tpu.memory_space<semaphore_mem>>
        tpu.wait_dma2 semaphore(%30 : memref<!tpu.dma_semaphore, #tpu.memory_space<semaphore_mem>>) src(%27 : memref<1x32xf32, #tpu.memory_space<any>>) dst(%28 : memref<1x32xf32, #tpu.memory_space<vmem>>)
      }
      %c8_i32_25 = arith.constant 8 : i32
    }
    %c8_i32_4 = arith.constant 8 : i32
    %c0 = arith.constant 0 : index
    %c0_5 = arith.constant 0 : index
    %2 = vector.load %arg8[%c0, %c0_5] : memref<64x32xf32, #tpu.memory_space<vmem>>, vector<64x32xf32>
    %3 = vector.shape_cast %2 : vector<64x32xf32> to vector<8x8x32xf32>
    %cst = arith.constant dense<0.000000e+00> : vector<8x32xf32>
    %4 = vector.multi_reduction <add>, %3, %cst [0] : vector<8x8x32xf32> to vector<8x32xf32>
    %cst_6 = arith.constant 1.250000e-01 : f32
    %5 = vector.broadcast %cst_6 : f32 to vector<8x32xf32>
    %6 = arith.mulf %4, %5 : vector<8x32xf32>
    %c0_7 = arith.constant 0 : index
    %c0_8 = arith.constant 0 : index
    %7 = vector.load %arg3[%c0_7, %c0_8] : memref<32x32xf32, #tpu.memory_space<vmem>>, vector<32x32xf32>
    %cst_9 = arith.constant dense<0.000000e+00> : vector<8x32xf32>
    %8 = tpu.matmul %6, %7, %cst_9 {dimension_numbers = #tpu.dot_dimension_numbers<[1], [0], [0], [1], [0, 0, 1, 1], [], []>} : vector<8x32xf32>, vector<32x32xf32>, vector<8x32xf32> -> vector<8x32xf32>
    %c0_10 = arith.constant 0 : index
    %c0_11 = arith.constant 0 : index
    %9 = vector.load %arg4[%c0_10, %c0_11] : memref<1x32xf32, #tpu.memory_space<vmem>>, vector<1x32xf32>
    %10 = vector.broadcast %9 : vector<1x32xf32> to vector<8x32xf32>
    %11 = arith.addf %8, %10 : vector<8x32xf32>
    %cst_12 = arith.constant 0.000000e+00 : f32
    %12 = vector.broadcast %cst_12 : f32 to vector<8x32xf32>
    %13 = arith.maximumf %11, %12 : vector<8x32xf32>
    %c0_13 = arith.constant 0 : index
    %c0_14 = arith.constant 0 : index
    %14 = vector.load %arg5[%c0_13, %c0_14] : memref<32x128xf32, #tpu.memory_space<vmem>>, vector<32x128xf32>
    %cst_15 = arith.constant dense<0.000000e+00> : vector<8x128xf32>
    %15 = tpu.matmul %13, %14, %cst_15 {dimension_numbers = #tpu.dot_dimension_numbers<[1], [0], [0], [1], [0, 0, 1, 1], [], []>} : vector<8x32xf32>, vector<32x128xf32>, vector<8x128xf32> -> vector<8x128xf32>
    %c0_16 = arith.constant 0 : index
    %c0_17 = arith.constant 0 : index
    %16 = vector.load %arg6[%c0_16, %c0_17] : memref<1x128xf32, #tpu.memory_space<vmem>>, vector<1x128xf32>
    %17 = vector.broadcast %16 : vector<1x128xf32> to vector<8x128xf32>
    %18 = arith.addf %15, %17 : vector<8x128xf32>
    %c0_18 = arith.constant 0 : index
    %c0_19 = arith.constant 0 : index
    %19 = vector.load %arg7[%c0_18, %c0_19] : memref<8x128xf32, #tpu.memory_space<vmem>>, vector<8x128xf32>
    tpu.vector_store %arg7[%c0_18, %c0_19], %18 {strides = array<i32>} : memref<8x128xf32, #tpu.memory_space<vmem>>, vector<8x128xf32>,
    return
  }
  func.func @transform_1(%arg0: i32, %arg1: memref<8x8xi32, #tpu.memory_space<smem>>) -> (i32, i32) {
    %c0_i32 = arith.constant 0 : i32
    %c0_i32_0 = arith.constant 0 : i32
    %c0_i32_1 = arith.constant 0 : i32
    return %c0_i32, %c0_i32_0 : i32, i32
  }
  func.func @transform_2(%arg0: i32, %arg1: memref<8x8xi32, #tpu.memory_space<smem>>) -> (i32, i32) {
    %c0_i32 = arith.constant 0 : i32
    %c0_i32_0 = arith.constant 0 : i32
    %c0_i32_1 = arith.constant 0 : i32
    return %c0_i32, %c0_i32_0 : i32, i32
  }
  func.func @transform_3(%arg0: i32, %arg1: memref<8x8xi32, #tpu.memory_space<smem>>) -> (i32, i32) {
    %c0_i32 = arith.constant 0 : i32
    %c0_i32_0 = arith.constant 0 : i32
    %c0_i32_1 = arith.constant 0 : i32
    return %c0_i32, %c0_i32_0 : i32, i32
  }
  func.func @transform_4(%arg0: i32, %arg1: memref<8x8xi32, #tpu.memory_space<smem>>) -> (i32, i32) {
    %c0_i32 = arith.constant 0 : i32
    %c0_i32_0 = arith.constant 0 : i32
    %c0_i32_1 = arith.constant 0 : i32
    return %c0_i32, %c0_i32_0 : i32, i32
  }
  func.func @transform_5(%arg0: i32, %arg1: memref<8x8xi32, #tpu.memory_space<smem>>) -> (i32, i32) {
    %c0_i32 = arith.constant 0 : i32
    %c0_i32_0 = arith.constant 0 : i32
    return %arg0, %c0_i32 : i32, i32
  }
}

</mosaic_0001>

<llo_original>
// kernel: tpu_custom_call.1
$region0: #{tpu_custom_call.1}
  #allocation0 [shape = 'u32[]', space=smem, size = 0x4, offset = 0x4, fixed_abs, tag = 'smem constant byte address 0x4 - core index']
  #allocation1 [shape = 'u32[144,128]{1,0:T(1,128)}', space=vmem, size = 0x12000, scoped, tag = 'internal scratch']
  #allocation2 [shape = 'f32[64,32]{1,0:T(8,128)}', space=vmem, size = 0x8000, scoped, tag = 'scratch operand']
  #allocation3 [shape = 's32[1]{0}', space=sflag, size = 0x4, scoped, tag = 'scratch operand']
  #allocation4 [shape = 's32[1]{0}', space=sflag, size = 0x4, scoped, tag = 'scoped memory for tpu_custom_call.1']
  #allocation5 [shape = 'u8[4096]{0}', space=smem, size = 0x1000, scoped, tag = 'prefetched SMEM operand 0']
  #allocation8 [shape = 's32[]', space=sflag, size = 0x4, offset = 0, fixed_abs, tag = 'sflag constant byte address 0x0 - dummy sync flag']
  %s0 = inlined_call_operand.vmem [shape: s32[8,8], index: 0, kind: input, shape index: {}]
  %s1 = inlined_call_operand.vmem [shape: f32[64,32], index: 1, kind: input, shape index: {}]
  %s2 = inlined_call_operand.vmem [shape: f32[32,32], index: 2, kind: input, shape index: {}]
  %s3 = inlined_call_operand.vmem [shape: f32[1,32], index: 3, kind: input, shape index: {}]
  %s4 = inlined_call_operand.vmem [shape: f32[32,128], index: 4, kind: input, shape index: {}]
  %s5 = inlined_call_operand.vmem [shape: f32[1,128], index: 5, kind: input, shape index: {}]
  %s6 = inlined_call_operand.hbm [shape: f32[8,128], index: 6, kind: output, shape index: {}]
  %s7 = sld [smem:[#allocation0]]
  $region84: #{tpu_custom_call.1} parent=0
    _
  %s9 = ssub.s32 1, %s7
  %s10 = scalar_select 0, %s9, %s7
  %s11 = sshll.u32 %s0, 4
  %s12 = int_to_ptr.vmem [resolvable:$true] %s11
  %14 = dma.vmem_to_smem %s12, 128, [#allocation5], [#allocation4]
  %15 = dma.done [#allocation4], 128
  %16 = sfence
  $region1: #{tpu_custom_call.1} parent=0
    #allocation6 [shape = 'u8[4096]{0}', space=vmem, size = 0x1000, scoped, tag = 'output window, operand 0, single buffered']
    #allocation7 [shape = 's32[1]{0}', space=sflag, size = 0x4, scoped, tag = 'scoped memory for tpu_custom_call.1']
    %17 = vsyncpa [#allocation7], 0
    // Predicated region
    $region2: #{tpu_custom_call.1} parent=1 // pred_check
      _
    $region3: #{tpu_custom_call.1} parent=1 // pred_check_branch
      %19 = sbr.rel (0) target = $region5
    $region4: #{tpu_custom_call.1} parent=1 // pred_region
      _
    $region5: #{tpu_custom_call.1} parent=1 // pred_fallthru
      _
    // Predicated region
    $region6: #{tpu_custom_call.1} parent=1 // pred_check
      _
    $region7: #{tpu_custom_call.1} parent=1 // pred_check_branch
      %21 = sbr.rel (0) target = $region9
    $region8: #{tpu_custom_call.1} parent=1 // pred_region
      _
    $region9: #{tpu_custom_call.1} parent=1 // pred_fallthru
      _
    // Predicated region
    $region10: #{tpu_custom_call.1} parent=1 // pred_check
      _
    $region11: #{tpu_custom_call.1} parent=1 // pred_check_branch
      %23 = sbr.rel (0) target = $region13
    $region12: #{tpu_custom_call.1} parent=1 // pred_region
      _
    $region13: #{tpu_custom_call.1} parent=1 // pred_fallthru
      _
    // Predicated region
    $region14: #{tpu_custom_call.1} parent=1 // pred_check
      _
    $region15: #{tpu_custom_call.1} parent=1 // pred_check_branch
      %25 = sbr.rel (0) target = $region17
    $region16: #{tpu_custom_call.1} parent=1 // pred_region
      _
    $region17: #{tpu_custom_call.1} parent=1 // pred_fallthru
      _
    loop: start=0, step=1, limit=8
    $region18: #{tpu_custom_call.1} parent=1 // loop_pre_header
      _
    $region19: #{tpu_custom_call.1} parent=1 // loop_header
      %s27 = sphi 0, %s31
      %p28 = scmp.ge.s32.totalorder %s27, 8
    $region20: #{tpu_custom_call.1} parent=1 // loop_header_branch
      %30 = sbr.rel (%p28) target = $region24
    $region21: #{tpu_custom_call.1} parent=1 // loop_body
      loop: start=0, step=1, limit=8
      $region25: #{tpu_custom_call.1} parent=21 // loop_pre_header
        _
      $region26: #{tpu_custom_call.1} parent=21 // loop_header
        %s33 = sphi 0, %s37
        %p34 = scmp.ge.s32.totalorder %s33, 8
      $region27: #{tpu_custom_call.1} parent=21 // loop_header_branch
        %36 = sbr.rel (%p34) target = $region31
      $region28: #{tpu_custom_call.1} parent=21 // loop_body
        %s38 = smul.u32 0, 8
        %s39 = sadd.s32 %s38, %s27
        %s40 = sshra.s32 %s33, 7
        %s41 = sand.u32 %s33, 127
        %s42 = sadd.s32 %s40, %s39
        %s43 = smul.u32 %s42, 128
        %s44 = sshra.s32 %s33, 7
        %s45 = sand.u32 %s33, 127
        %s46 = sadd.s32 %s43, %s45
        %s47 = sld [smem:[#allocation5 + %s46]]
        %s48 = smul.u32 %s33, 8
        %s49 = sadd.s32 %s48, %s27
        %s50 = scalar_lea.vmem %s1, %s47
        %s51 = scalar_lea.vmem [#allocation2], %s49
        %p53 = scmp.lt.u32.totalorder 1, 8
        %p54 = pneg %p53
        // Predicated region
        $region32: #{tpu_custom_call.1} parent=28 // pred_check
          _
        $region33: #{tpu_custom_call.1} parent=28 // pred_check_branch
          %56 = sbr.rel (%p53) target = $region35
        $region34: #{tpu_custom_call.1} parent=28 // pred_region
          %s72 = sand.u32 1, 7
          %p73 = scmp.eq.s32.totalorder %s72, 0
          %p74 = pneg %p73
          // Predicated region
          $region47: #{tpu_custom_call.1} parent=34 // pred_check
            _
          $region48: #{tpu_custom_call.1} parent=34 // pred_check_branch
            %76 = sbr.rel (%p73) target = $region50
          $region49: #{tpu_custom_call.1} parent=34 // pred_region
            %s77 = sand.u32 1, 7
            %s78 = ssub.s32 1, %s77
            %s79 = scalar_lea.vmem %s50, %s78
            %s80 = ssub.s32 1, %s77
            %s81 = scalar_lea.vmem %s51, %s80 [#allocation2]
            %s82 = sshll.u32 1, %s77
            %s83 = ssub.s32 %s82, 1
            loop: start=0, step=1, limit=1
            $region51: #{tpu_custom_call.1} parent=49 // loop_pre_header
              _
            $region52: #{tpu_custom_call.1} parent=49 // loop_header
              %s85 = sphi 0, %s89
              %p86 = scmp.ge.s32.totalorder %s85, 1
              %s90 = sphi %s79, %s79
              %s91 = sphi %s81, %s81
            $region53: #{tpu_custom_call.1} parent=49 // loop_header_branch
              %88 = sbr.rel (%p86) target = $region57
            $region54: #{tpu_custom_call.1} parent=49 // loop_body
              %v92 = vld [vmem:[%s90] sm:%s83]
              %93 = vst [vmem:[%s91] sm:%s83] %v92
            $region55: #{tpu_custom_call.1} parent=49 // loop_footer
              %s89 = sadd.s32 1, %s85
            $region56: #{tpu_custom_call.1} parent=49 // loop_footer_branch
              %84 = sbr.rel target = $region52
            $region57: #{tpu_custom_call.1} parent=49 // loop_exit
              _
          $region50: #{tpu_custom_call.1} parent=34 // pred_fallthru
            _
        $region35: #{tpu_custom_call.1} parent=28 // pred_fallthru
          _
        // Predicated region
        $region36: #{tpu_custom_call.1} parent=28 // pred_check
          %p57 = pneg %p53
        $region37: #{tpu_custom_call.1} parent=28 // pred_check_branch
          %59 = sbr.rel (%p57) target = $region39
        $region38: #{tpu_custom_call.1} parent=28 // pred_region
          %s60 = sshll.u32 1, 1
          %s61 = ssub.s32 %s60, 1
          loop: start=0, step=1, limit=1
          $region40: #{tpu_custom_call.1} parent=38 // loop_pre_header
            _
          $region41: #{tpu_custom_call.1} parent=38 // loop_header
            %s63 = sphi 0, %s67
            %p64 = scmp.ge.s32.totalorder %s63, 1
            %s68 = sphi %s50, %s50
            %s69 = sphi %s51, %s51
          $region42: #{tpu_custom_call.1} parent=38 // loop_header_branch
            %66 = sbr.rel (%p64) target = $region46
          $region43: #{tpu_custom_call.1} parent=38 // loop_body
            %v70 = vld [vmem:[%s68] sm:%s61]
            %71 = vst [vmem:[%s69] sm:%s61] %v70
          $region44: #{tpu_custom_call.1} parent=38 // loop_footer
            %s67 = sadd.s32 1, %s63
          $region45: #{tpu_custom_call.1} parent=38 // loop_footer_branch
            %62 = sbr.rel target = $region41
          $region46: #{tpu_custom_call.1} parent=38 // loop_exit
            _
        $region39: #{tpu_custom_call.1} parent=28 // pred_fallthru
          _
        // Predicated region
        $region58: #{tpu_custom_call.1} parent=28 // pred_check
          _
        $region59: #{tpu_custom_call.1} parent=28 // pred_check_branch
          %96 = sbr.rel (0) target = $region61
        $region60: #{tpu_custom_call.1} parent=28 // pred_region
          %97 = vsyncadd [#allocation3], 16
        $region61: #{tpu_custom_call.1} parent=28 // pred_fallthru
          _
      $region29: #{tpu_custom_call.1} parent=21 // loop_footer
        %s37 = sadd.s32 1, %s33
      $region30: #{tpu_custom_call.1} parent=21 // loop_footer_branch
        %32 = sbr.rel target = $region26
      $region31: #{tpu_custom_call.1} parent=21 // loop_exit
        _
    $region22: #{tpu_custom_call.1} parent=1 // loop_footer
      %s31 = sadd.s32 1, %s27
    $region23: #{tpu_custom_call.1} parent=1 // loop_footer_branch
      %26 = sbr.rel target = $region19
    $region24: #{tpu_custom_call.1} parent=1 // loop_exit
      _
    loop: start=0, step=1, limit=8
    $region62: #{tpu_custom_call.1} parent=1 // loop_pre_header
      _
    $region63: #{tpu_custom_call.1} parent=1 // loop_header
      %s99 = sphi 0, %s103
      %p100 = scmp.ge.s32.totalorder %s99, 8
    $region64: #{tpu_custom_call.1} parent=1 // loop_header_branch
      %102 = sbr.rel (%p100) target = $region68
    $region65: #{tpu_custom_call.1} parent=1 // loop_body
      loop: start=0, step=1, limit=8
      $region69: #{tpu_custom_call.1} parent=65 // loop_pre_header
        _
      $region70: #{tpu_custom_call.1} parent=65 // loop_header
        %s105 = sphi 0, %s109
        %p106 = scmp.ge.s32.totalorder %s105, 8
      $region71: #{tpu_custom_call.1} parent=65 // loop_header_branch
        %108 = sbr.rel (%p106) target = $region75
      $region72: #{tpu_custom_call.1} parent=65 // loop_body
        %s110 = smul.u32 1, 1
        %s111 = sshll.u32 %s110, 4
        %112 = dma.done [#allocation3], %s111
      $region73: #{tpu_custom_call.1} parent=65 // loop_footer
        %s109 = sadd.s32 1, %s105
      $region74: #{tpu_custom_call.1} parent=65 // loop_footer_branch
        %104 = sbr.rel target = $region70
      $region75: #{tpu_custom_call.1} parent=65 // loop_exit
        _
    $region66: #{tpu_custom_call.1} parent=1 // loop_footer
      %s103 = sadd.s32 1, %s99
    $region67: #{tpu_custom_call.1} parent=1 // loop_footer_branch
      %98 = sbr.rel target = $region63
    $region68: #{tpu_custom_call.1} parent=1 // loop_exit
      _
    %v113 = vld [vmem:[#allocation2] sm:$0xff]
    %v114 = vld [vmem:[#allocation2 + $0x8] sm:$0xff]
    %v115 = vld [vmem:[#allocation2 + $0x10] sm:$0xff]
    %v116 = vld [vmem:[#allocation2 + $0x18] sm:$0xff]
    %v117 = vld [vmem:[#allocation2 + $0x20] sm:$0xff]
    %v118 = vld [vmem:[#allocation2 + $0x28] sm:$0xff]
    %v119 = vld [vmem:[#allocation2 + $0x30] sm:$0xff]
    %v120 = vld [vmem:[#allocation2 + $0x38] sm:$0xff]
    %vm121 = vcmask 261120
    %v122 = vsel %vm121, %v113, 0.0
    %v123 = vsel %vm121, %v114, 0.0
    %v124 = vadd.f32 %v122, %v123
    %v125 = vsel %vm121, %v115, 0.0
    %v126 = vadd.f32 %v124, %v125
    %v127 = vsel %vm121, %v116, 0.0
    %v128 = vadd.f32 %v126, %v127
    %v129 = vsel %vm121, %v117, 0.0
    %v130 = vadd.f32 %v128, %v129
    %v131 = vsel %vm121, %v118, 0.0
    %v132 = vadd.f32 %v130, %v131
    %v133 = vsel %vm121, %v119, 0.0
    %v134 = vadd.f32 %v132, %v133
    %v135 = vsel %vm121, %v120, 0.0
    %v136 = vadd.f32 %v134, %v135
    %v137 = vmul.f32 %v136, 0.125
    %v138 = vld [vmem:[%s2] sm:$0xff]
    %v139 = vld [vmem:[%s2 + $0x8] sm:$0xff]
    %v140 = vld [vmem:[%s2 + $0x10] sm:$0xff]
    %v141 = vld [vmem:[%s2 + $0x18] sm:$0xff]
    %v142 = vld [vmem:[%s3] sm:$0x1]
    %v144 = vlaneseq
    %v145 = vshrl.u32 %v144, 7
    %v146 = vsub.s32 0, %v145
    %v147 = vrot.slane %v142, %v146
    %v150 = vsel %vm121, %v137, 0
    %152 = vmatprep.subr.mxu0 0.0
    %153 = vmatpush1.msra.mxu0 0.0
    %154 = vmatprep.subr.mxu0 0.0
    %155 = vmatpush1.msra.mxu0 0.0
    %156 = vmatprep.subr.mxu0 0.0
    %157 = vmatpush1.msra.mxu0 0.0
    %158 = vmatprep.subr.mxu0 0.0
    %159 = vmatpush1.msra.mxu0 0.0
    %160 = vmatprep.subr.mxu0 0.0
    %161 = vmatpush1.msra.mxu0 0.0
    %162 = vmatprep.subr.mxu0 0.0
    %163 = vmatpush1.msra.mxu0 0.0
    %164 = vmatprep.subr.mxu0 0.0
    %165 = vmatpush1.msra.mxu0 0.0
    %166 = vmatprep.subr.mxu0 0.0
    %167 = vmatpush1.msra.mxu0 0.0
    %168 = vmatprep.subr.mxu0 0.0
    %169 = vmatpush1.msra.mxu0 0.0
    %170 = vmatprep.subr.mxu0 0.0
    %171 = vmatpush1.msra.mxu0 0.0
    %172 = vmatprep.subr.mxu0 0.0
    %173 = vmatpush1.msra.mxu0 0.0
    %174 = vmatprep.subr.mxu0 0.0
    %175 = vmatpush1.msra.mxu0 0.0
    %176 = vmatprep.subr.mxu0 0.0
    %177 = vmatpush1.msra.mxu0 %v141
    %178 = vmatprep.subr.mxu0 0.0
    %179 = vmatpush1.msra.mxu0 %v140
    %180 = vmatprep.subr.mxu0 0.0
    %181 = vmatpush1.msra.mxu0 %v139
    %182 = vmatprep.subr.mxu0 0.0
    %183 = vmatpush1.msra.mxu0 %v138
    %184 = vmatprep.subr.mxu0 0.0
    %185 = vmatpush2.msra.mxu0 0.0
    %186 = vmatprep.subr.mxu0 0.0
    %187 = vmatpush2.msra.mxu0 0.0
    %188 = vmatprep.subr.mxu0 0.0
    %189 = vmatpush2.msra.mxu0 0.0
    %190 = vmatprep.subr.mxu0 0.0
    %191 = vmatpush2.msra.mxu0 0.0
    %192 = vmatprep.subr.mxu0 0.0
    %193 = vmatpush2.msra.mxu0 0.0
    %194 = vmatprep.subr.mxu0 0.0
    %195 = vmatpush2.msra.mxu0 0.0
    %196 = vmatprep.subr.mxu0 0.0
    %197 = vmatpush2.msra.mxu0 0.0
    %198 = vmatprep.subr.mxu0 0.0
    %199 = vmatpush2.msra.mxu0 0.0
    %200 = vmatprep.subr.mxu0 0.0
    %201 = vmatpush2.msra.mxu0 0.0
    %202 = vmatprep.subr.mxu0 0.0
    %203 = vmatpush2.msra.mxu0 0.0
    %204 = vmatprep.subr.mxu0 0.0
    %205 = vmatpush2.msra.mxu0 0.0
    %206 = vmatprep.subr.mxu0 0.0
    %207 = vmatpush2.msra.mxu0 0.0
    %208 = vmatprep.subr.mxu0 0.0
    %209 = vmatpush2.msra.mxu0 0.0
    %210 = vmatprep.subr.mxu0 0.0
    %211 = vmatpush2.msra.mxu0 0.0
    %212 = vmatprep.subr.mxu0 0.0
    %213 = vmatpush2.msra.mxu0 0.0
    %214 = vmatprep.subr.mxu0 0.0
    %215 = vmatpush2.msra.mxu0 0.0
    %216 = vmatprep.mubr.f32.mxu0 0.0
    %217 = vmatmul.mubr.f32.gmra.mxu0 %v150
    %v218 = vpop.f32.mrf.mxu0
    %v219 = vadd.f32 %v147, %v218
    %v220 = vpop.f32.mrf.mxu0
    %221 = vdwg.mxu0
    %v222 = vmax.f32 %v219, 0.0
    %v223 = vld [vmem:[%s4] sm:$0xff]
    %v224 = vld [vmem:[%s4 + $0x8] sm:$0xff]
    %v225 = vld [vmem:[%s4 + $0x10] sm:$0xff]
    %v226 = vld [vmem:[%s4 + $0x18] sm:$0xff]
    %v227 = vld [vmem:[%s5] sm:$0x1]
    %v229 = vlaneseq
    %v230 = vshrl.u32 %v229, 7
    %v231 = vsub.s32 0, %v230
    %v232 = vrot.slane %v227, %v231
    %v235 = vsel %vm121, %v222, 0
    %237 = vmatprep.subr.mxu0 0.0
    %238 = vmatpush1.msra.mxu0 0.0
    %239 = vmatprep.subr.mxu0 0.0
    %240 = vmatpush1.msra.mxu0 0.0
    %241 = vmatprep.subr.mxu0 0.0
    %242 = vmatpush1.msra.mxu0 0.0
    %243 = vmatprep.subr.mxu0 0.0
    %244 = vmatpush1.msra.mxu0 0.0
    %245 = vmatprep.subr.mxu0 0.0
    %246 = vmatpush1.msra.mxu0 0.0
    %247 = vmatprep.subr.mxu0 0.0
    %248 = vmatpush1.msra.mxu0 0.0
    %249 = vmatprep.subr.mxu0 0.0
    %250 = vmatpush1.msra.mxu0 0.0
    %251 = vmatprep.subr.mxu0 0.0
    %252 = vmatpush1.msra.mxu0 0.0
    %253 = vmatprep.subr.mxu0 0.0
    %254 = vmatpush1.msra.mxu0 0.0
    %255 = vmatprep.subr.mxu0 0.0
    %256 = vmatpush1.msra.mxu0 0.0
    %257 = vmatprep.subr.mxu0 0.0
    %258 = vmatpush1.msra.mxu0 0.0
    %259 = vmatprep.subr.mxu0 0.0
    %260 = vmatpush1.msra.mxu0 0.0
    %261 = vmatprep.subr.mxu0 0.0
    %262 = vmatpush1.msra.mxu0 %v226
    %263 = vmatprep.subr.mxu0 0.0
    %264 = vmatpush1.msra.mxu0 %v225
    %265 = vmatprep.subr.mxu0 0.0
    %266 = vmatpush1.msra.mxu0 %v224
    %267 = vmatprep.subr.mxu0 0.0
    %268 = vmatpush1.msra.mxu0 %v223
    %269 = vmatprep.subr.mxu0 0.0
    %270 = vmatpush2.msra.mxu0 0.0
    %271 = vmatprep.subr.mxu0 0.0
    %272 = vmatpush2.msra.mxu0 0.0
    %273 = vmatprep.subr.mxu0 0.0
    %274 = vmatpush2.msra.mxu0 0.0
    %275 = vmatprep.subr.mxu0 0.0
    %276 = vmatpush2.msra.mxu0 0.0
    %277 = vmatprep.subr.mxu0 0.0
    %278 = vmatpush2.msra.mxu0 0.0
    %279 = vmatprep.subr.mxu0 0.0
    %280 = vmatpush2.msra.mxu0 0.0
    %281 = vmatprep.subr.mxu0 0.0
    %282 = vmatpush2.msra.mxu0 0.0
    %283 = vmatprep.subr.mxu0 0.0
    %284 = vmatpush2.msra.mxu0 0.0
    %285 = vmatprep.subr.mxu0 0.0
    %286 = vmatpush2.msra.mxu0 0.0
    %287 = vmatprep.subr.mxu0 0.0
    %288 = vmatpush2.msra.mxu0 0.0
    %289 = vmatprep.subr.mxu0 0.0
    %290 = vmatpush2.msra.mxu0 0.0
    %291 = vmatprep.subr.mxu0 0.0
    %292 = vmatpush2.msra.mxu0 0.0
    %293 = vmatprep.subr.mxu0 0.0
    %294 = vmatpush2.msra.mxu0 0.0
    %295 = vmatprep.subr.mxu0 0.0
    %296 = vmatpush2.msra.mxu0 0.0
    %297 = vmatprep.subr.mxu0 0.0
    %298 = vmatpush2.msra.mxu0 0.0
    %299 = vmatprep.subr.mxu0 0.0
    %300 = vmatpush2.msra.mxu0 0.0
    %301 = vmatprep.mubr.f32.mxu0 0.0
    %302 = vmatmul.mubr.f32.gmra.mxu0 %v235
    %v303 = vpop.f32.mrf.mxu0
    %v304 = vadd.f32 %v232, %v303
    %v305 = vpop.f32.mrf.mxu0
    %306 = vdwg.mxu0
    %307 = vst [vmem:[#allocation6] sm:$0xff] %v304
    // Predicated region
    $region76: #{tpu_custom_call.1} parent=1 // pred_check
      _
    $region77: #{tpu_custom_call.1} parent=1 // pred_check_branch
      %309 = sbr.rel (0) target = $region79
    $region78: #{tpu_custom_call.1} parent=1 // pred_region
      %s311 = ssub.s32 128, 128
      %312 = vsyncadd [#allocation7], %s311
      %s314 = sshll.u32 [#allocation6], 4
      %s315 = int_to_ptr.vmem [resolvable:$true] %s314
      %317 = dma.vmem_to_hbm [thread:$0]  %s315, 128, %s6, [#allocation7]
    $region79: #{tpu_custom_call.1} parent=1 // pred_fallthru
      _
    // Predicated region
    $region80: #{tpu_custom_call.1} parent=1 // pred_check
      _
    $region81: #{tpu_custom_call.1} parent=1 // pred_check_branch
      %319 = sbr.rel (0) target = $region83
    $region82: #{tpu_custom_call.1} parent=1 // pred_region
      %320 = dma.done [#allocation7], 128
    $region83: #{tpu_custom_call.1} parent=1 // pred_fallthru
      _
    %321 = vsyncpa [#allocation7], 1
  %322 = vsyncmov [#allocation3]
  %s323 = vpop.sfrf %322
  %p324 = scmp.eq.s32.totalorder %s323, 0
  %p325 = pneg %p324
  %327 = shalt.err (%p325)

</llo_original>
